<compile_context>
chip_gen: v7x
topology: tpu7x:2x2x1
jax: 0.10.0
libtpu: 0.0.40
codegen_flags: <defaults>
</compile_context>

<pallas_src>
import jax
import jax.numpy as jnp
from jax.experimental import pallas as pl
from jax.experimental.pallas import tpu as pltpu

# Static recombination index list from the PyTorch module.
RECAT_IDX = [0, 1, 2, 3, 4, 5, 6, 7, 8,
             6, 7, 9, 6, 7, 10, 6, 7, 11, 6, 7, 12,
             6, 7, 13, 6, 7, 14, 6, 7, 15]
N_GROUPS = 10                     # output groups
GROUP = 3                         # rows per group
N_OUT_ROWS = N_GROUPS * GROUP     # 30
N_IN_ROWS = 16                    # only input rows 0..15 are ever used

# Tiling knobs (v7x-safe conservative defaults; also fine on v5e/v6e).
_VMEM_BUDGET = 36 << 20           # cap on double-buffered in+out working set
_VMEM_LIMIT = 48 << 20            # < 64 MiB physical VMEM on v7x
_PAYLOAD_TARGET = 4 << 20         # per-step HBM traffic target
_PAYLOAD_FLOOR = 1 << 20          # don't shrink tiles below this for step count
_MIN_STEPS = 8                    # feed both v7x TensorCores


def _recat_kernel(x_ref, o_ref):
    # x_ref: (tb, 16, ts, d) VMEM tile, o_ref: (tb, 30, ts, d) VMEM tile.
    # Groups 0..2 are contiguous: output rows 0..8 <- input rows 0..8.
    o_ref[:, 0:9] = x_ref[:, 0:9]
    # Groups 3..9 are (row 6, row 7, row g+6).  Re-read rows 6:8 from VMEM each
    # time (cheap) instead of keeping a huge value live across 8 stores.
    for g in range(3, N_GROUPS):
        base = GROUP * g
        o_ref[:, base:base + 2] = x_ref[:, 6:8]
        o_ref[:, base + 2] = x_ref[:, g + 6]


def _sublane_granularity(itemsize):
    # Sub-32-bit dtypes pack along sublanes: bf16 vreg is [16,128], int8 [32,128].
    if itemsize >= 4:
        return 8
    if itemsize == 2:
        return 16
    return 32


def _maybe_fold_lanes(s, d):
    """Fold (s, d) -> (s*d/128, 128) when d is not lane-dense but s*d allows it."""
    if d % 128 == 0:
        return s, d, False
    if (s * d) % 128 == 0:
        return (s * d) // 128, 128, True
    return s, d, False


def _pick_tiles(b, s, d, itemsize):
    """Pick (tb, ts) for grid=(cdiv(b,tb), cdiv(s,ts)).

    Targets ~_PAYLOAD_TARGET of in+out bytes per grid step, keeps the
    double-buffered VMEM working set under _VMEM_BUDGET, and (best effort)
    splits tiles so the grid has >= _MIN_STEPS steps without dropping the
    per-step payload below _PAYLOAD_FLOOR.
    """
    sublane = _sublane_granularity(itemsize)
    unit = (N_IN_ROWS + N_OUT_ROWS) * d * itemsize        # bytes per tb*ts == 1

    max_prod = max(sublane, _VMEM_BUDGET // (2 * unit))    # VMEM (double-buffer) cap
    want_prod = max(sublane, -(-_PAYLOAD_TARGET // unit))  # payload target (ceil)
    prod = min(max_prod, want_prod)

    # s-tile: full extent if it fits (always a legal block dim), else a
    # sublane-granular tile (satisfies the (8,128) divisibility rule).
    if s <= prod:
        ts = s
    else:
        ts = max(sublane, (prod // sublane) * sublane)
    tb = max(1, min(b, prod // max(ts, 1)))

    def payload(tb_, ts_):
        return tb_ * ts_ * unit

    # Best-effort: split tiles until >= _MIN_STEPS grid steps (v7x has 2 TCs),
    # but never let a single giant tile survive, and never shrink below the
    # payload floor otherwise.
    while True:
        n_steps = pl.cdiv(b, tb) * pl.cdiv(s, ts)
        if n_steps >= _MIN_STEPS:
            break
        must_split = n_steps == 1
        if tb > 1 and (must_split or payload(tb // 2, ts) >= _PAYLOAD_FLOOR):
            tb = tb // 2
            continue
        ts_new = max(sublane, ((ts // 2) // sublane) * sublane)
        if ts_new < ts and (must_split or payload(tb, ts_new) >= _PAYLOAD_FLOOR):
            ts = ts_new
            continue
        break

    return tb, ts


def recat(x):
    """x: (b, n, s, d) with n >= 16. Returns (b, 10, 3, s, d)."""
    b, n, s, d = x.shape
    assert n >= 16, "Recat requires n >= 16"
    itemsize = x.dtype.itemsize

    # Lane densification when d is not a multiple of 128 (free C-order reshape).
    s2, d2, folded = _maybe_fold_lanes(s, d)
    xk = x.reshape(b, n, s2, d2) if folded else x

    tb, ts = _pick_tiles(b, s2, d2, itemsize)
    grid = (pl.cdiv(b, tb), pl.cdiv(s2, ts))

    bytes_accessed = (N_IN_ROWS + N_OUT_ROWS) * b * s2 * d2 * itemsize

    out_flat = pl.pallas_call(
        _recat_kernel,
        out_shape=jax.ShapeDtypeStruct((b, N_OUT_ROWS, s2, d2), x.dtype),
        grid=grid,
        in_specs=[
            # Only rows 0..15 of the n axis are ever fetched, regardless of n.
            pl.BlockSpec((tb, N_IN_ROWS, ts, d2), lambda i, j: (i, 0, j, 0)),
        ],
        out_specs=pl.BlockSpec((tb, N_OUT_ROWS, ts, d2), lambda i, j: (i, 0, j, 0)),
        compiler_params=pltpu.CompilerParams(
            dimension_semantics=("parallel", "parallel"),
            vmem_limit_bytes=_VMEM_LIMIT,
        ),
        cost_estimate=pl.CostEstimate(
            flops=0, transcendentals=0, bytes_accessed=bytes_accessed),
    )(xk)

    # Pure-shape glue (C-order preserving, zero-cost):
    # (b, 30, s2, d2) -> (b, 10, 3, s, d)
    return out_flat.reshape(b, N_GROUPS, GROUP, s, d)


def recat_ref(x):
    idx = jnp.array(RECAT_IDX, dtype=jnp.int32)
    b, n, s, d = x.shape
    return jnp.take(x, idx, axis=1).reshape(b, N_GROUPS, GROUP, s, d)


if __name__ == "__main__":
    key = jax.random.PRNGKey(0)

    # Test 1: lane-dense f32 case.
    b, n, s, d = 2, 16, 16, 128   # n must be >= 16 per the index list
    x = jax.random.normal(key, (b, n, s, d), dtype=jnp.float32)
    out = jax.block_until_ready(recat(x))
    ref = recat_ref(x)
    assert out.shape == (b, 10, 3, s, d)
    assert jnp.array_equal(out, ref), "Pallas output mismatch vs reference (f32)"

    # Test 2: n > 16, d < 128 (exercises lane folding), bf16 (sublane packing),
    # and the cdiv / partial-block path.
    b2, n2, s2, d2 = 2, 18, 24, 64
    x2 = jax.random.normal(jax.random.PRNGKey(1), (b2, n2, s2, d2),
                           dtype=jnp.bfloat16)
    out2 = jax.block_until_ready(recat(x2))
    ref2 = recat_ref(x2)
    assert out2.shape == (b2, 10, 3, s2, d2)
    assert jnp.array_equal(out2, ref2), "Pallas output mismatch vs reference (bf16)"

    print("KERNEL_OK")
</pallas_src>

<mosaic_0001>
module attributes {stable_mosaic.version = 11 : i64} {
  func.func @_recat_kernel(%arg0: i32, %arg1: i32, %arg2: memref<1x16x16x128xf32, #tpu.memory_space<vmem>>, %arg3: memref<1x30x16x128xf32, #tpu.memory_space<vmem>>) attributes {dimension_semantics = [#tpu.dimension_semantics<parallel>, #tpu.dimension_semantics<parallel>], iteration_bounds = array<i64: 2, 1>, scalar_prefetch = 0 : i64, scratch_operands = 0 : i64, tpu.core_type = #tpu.core_type<tc>, window_params = [{transform_indices = @transform_0, window_bounds = array<i64: 1, 16, 16, 128>}, {transform_indices = @transform_1, window_bounds = array<i64: 1, 30, 16, 128>}]} {
    %c0 = arith.constant 0 : index
    %c0_0 = arith.constant 0 : index
    %c0_1 = arith.constant 0 : index
    %c0_2 = arith.constant 0 : index
    %0 = vector.load %arg2[%c0, %c0_0, %c0_1, %c0_2] : memref<1x16x16x128xf32, #tpu.memory_space<vmem>>, vector<1x9x16x128xf32>
    %c0_3 = arith.constant 0 : index
    %c0_4 = arith.constant 0 : index
    %c0_5 = arith.constant 0 : index
    %c0_6 = arith.constant 0 : index
    %1 = vector.load %arg3[%c0_3, %c0_4, %c0_5, %c0_6] : memref<1x30x16x128xf32, #tpu.memory_space<vmem>>, vector<1x9x16x128xf32>
    tpu.vector_store %arg3[%c0_3, %c0_4, %c0_5, %c0_6], %0 {strides = array<i32>} : memref<1x30x16x128xf32, #tpu.memory_space<vmem>>, vector<1x9x16x128xf32>,
    %c0_7 = arith.constant 0 : index
    %c6 = arith.constant 6 : index
    %c0_8 = arith.constant 0 : index
    %c0_9 = arith.constant 0 : index
    %2 = vector.load %arg2[%c0_7, %c6, %c0_8, %c0_9] : memref<1x16x16x128xf32, #tpu.memory_space<vmem>>, vector<1x2x16x128xf32>
    %c0_10 = arith.constant 0 : index
    %c9 = arith.constant 9 : index
    %c0_11 = arith.constant 0 : index
    %c0_12 = arith.constant 0 : index
    %3 = vector.load %arg3[%c0_10, %c9, %c0_11, %c0_12] : memref<1x30x16x128xf32, #tpu.memory_space<vmem>>, vector<1x2x16x128xf32>
    tpu.vector_store %arg3[%c0_10, %c9, %c0_11, %c0_12], %2 {strides = array<i32>} : memref<1x30x16x128xf32, #tpu.memory_space<vmem>>, vector<1x2x16x128xf32>,
    %c0_13 = arith.constant 0 : index
    %c9_14 = arith.constant 9 : index
    %c0_15 = arith.constant 0 : index
    %c0_16 = arith.constant 0 : index
    %4 = vector.load %arg2[%c0_13, %c9_14, %c0_15, %c0_16] : memref<1x16x16x128xf32, #tpu.memory_space<vmem>>, vector<1x1x16x128xf32>
    %5 = vector.shape_cast %4 : vector<1x1x16x128xf32> to vector<1x16x128xf32>
    %c0_17 = arith.constant 0 : index
    %c11 = arith.constant 11 : index
    %c0_18 = arith.constant 0 : index
    %c0_19 = arith.constant 0 : index
    %6 = vector.load %arg3[%c0_17, %c11, %c0_18, %c0_19] : memref<1x30x16x128xf32, #tpu.memory_space<vmem>>, vector<1x1x16x128xf32>
    %7 = vector.shape_cast %6 : vector<1x1x16x128xf32> to vector<1x16x128xf32>
    %8 = vector.shape_cast %5 : vector<1x16x128xf32> to vector<1x1x16x128xf32>
    tpu.vector_store %arg3[%c0_17, %c11, %c0_18, %c0_19], %8 {strides = array<i32>} : memref<1x30x16x128xf32, #tpu.memory_space<vmem>>, vector<1x1x16x128xf32>,
    %c0_20 = arith.constant 0 : index
    %c6_21 = arith.constant 6 : index
    %c0_22 = arith.constant 0 : index
    %c0_23 = arith.constant 0 : index
    %9 = vector.load %arg2[%c0_20, %c6_21, %c0_22, %c0_23] : memref<1x16x16x128xf32, #tpu.memory_space<vmem>>, vector<1x2x16x128xf32>
    %c0_24 = arith.constant 0 : index
    %c12 = arith.constant 12 : index
    %c0_25 = arith.constant 0 : index
    %c0_26 = arith.constant 0 : index
    %10 = vector.load %arg3[%c0_24, %c12, %c0_25, %c0_26] : memref<1x30x16x128xf32, #tpu.memory_space<vmem>>, vector<1x2x16x128xf32>
    tpu.vector_store %arg3[%c0_24, %c12, %c0_25, %c0_26], %9 {strides = array<i32>} : memref<1x30x16x128xf32, #tpu.memory_space<vmem>>, vector<1x2x16x128xf32>,
    %c0_27 = arith.constant 0 : index
    %c10 = arith.constant 10 : index
    %c0_28 = arith.constant 0 : index
    %c0_29 = arith.constant 0 : index
    %11 = vector.load %arg2[%c0_27, %c10, %c0_28, %c0_29] : memref<1x16x16x128xf32, #tpu.memory_space<vmem>>, vector<1x1x16x128xf32>
    %12 = vector.shape_cast %11 : vector<1x1x16x128xf32> to vector<1x16x128xf32>
    %c0_30 = arith.constant 0 : index
    %c14 = arith.constant 14 : index
    %c0_31 = arith.constant 0 : index
    %c0_32 = arith.constant 0 : index
    %13 = vector.load %arg3[%c0_30, %c14, %c0_31, %c0_32] : memref<1x30x16x128xf32, #tpu.memory_space<vmem>>, vector<1x1x16x128xf32>
    %14 = vector.shape_cast %13 : vector<1x1x16x128xf32> to vector<1x16x128xf32>
    %15 = vector.shape_cast %12 : vector<1x16x128xf32> to vector<1x1x16x128xf32>
    tpu.vector_store %arg3[%c0_30, %c14, %c0_31, %c0_32], %15 {strides = array<i32>} : memref<1x30x16x128xf32, #tpu.memory_space<vmem>>, vector<1x1x16x128xf32>,
    %c0_33 = arith.constant 0 : index
    %c6_34 = arith.constant 6 : index
    %c0_35 = arith.constant 0 : index
    %c0_36 = arith.constant 0 : index
    %16 = vector.load %arg2[%c0_33, %c6_34, %c0_35, %c0_36] : memref<1x16x16x128xf32, #tpu.memory_space<vmem>>, vector<1x2x16x128xf32>
    %c0_37 = arith.constant 0 : index
    %c15 = arith.constant 15 : index
    %c0_38 = arith.constant 0 : index
    %c0_39 = arith.constant 0 : index
    %17 = vector.load %arg3[%c0_37, %c15, %c0_38, %c0_39] : memref<1x30x16x128xf32, #tpu.memory_space<vmem>>, vector<1x2x16x128xf32>
    tpu.vector_store %arg3[%c0_37, %c15, %c0_38, %c0_39], %16 {strides = array<i32>} : memref<1x30x16x128xf32, #tpu.memory_space<vmem>>, vector<1x2x16x128xf32>,
    %c0_40 = arith.constant 0 : index
    %c11_41 = arith.constant 11 : index
    %c0_42 = arith.constant 0 : index
    %c0_43 = arith.constant 0 : index
    %18 = vector.load %arg2[%c0_40, %c11_41, %c0_42, %c0_43] : memref<1x16x16x128xf32, #tpu.memory_space<vmem>>, vector<1x1x16x128xf32>
    %19 = vector.shape_cast %18 : vector<1x1x16x128xf32> to vector<1x16x128xf32>
    %c0_44 = arith.constant 0 : index
    %c17 = arith.constant 17 : index
    %c0_45 = arith.constant 0 : index
    %c0_46 = arith.constant 0 : index
    %20 = vector.load %arg3[%c0_44, %c17, %c0_45, %c0_46] : memref<1x30x16x128xf32, #tpu.memory_space<vmem>>, vector<1x1x16x128xf32>
    %21 = vector.shape_cast %20 : vector<1x1x16x128xf32> to vector<1x16x128xf32>
    %22 = vector.shape_cast %19 : vector<1x16x128xf32> to vector<1x1x16x128xf32>
    tpu.vector_store %arg3[%c0_44, %c17, %c0_45, %c0_46], %22 {strides = array<i32>} : memref<1x30x16x128xf32, #tpu.memory_space<vmem>>, vector<1x1x16x128xf32>,
    %c0_47 = arith.constant 0 : index
    %c6_48 = arith.constant 6 : index
    %c0_49 = arith.constant 0 : index
    %c0_50 = arith.constant 0 : index
    %23 = vector.load %arg2[%c0_47, %c6_48, %c0_49, %c0_50] : memref<1x16x16x128xf32, #tpu.memory_space<vmem>>, vector<1x2x16x128xf32>
    %c0_51 = arith.constant 0 : index
    %c18 = arith.constant 18 : index
    %c0_52 = arith.constant 0 : index
    %c0_53 = arith.constant 0 : index
    %24 = vector.load %arg3[%c0_51, %c18, %c0_52, %c0_53] : memref<1x30x16x128xf32, #tpu.memory_space<vmem>>, vector<1x2x16x128xf32>
    tpu.vector_store %arg3[%c0_51, %c18, %c0_52, %c0_53], %23 {strides = array<i32>} : memref<1x30x16x128xf32, #tpu.memory_space<vmem>>, vector<1x2x16x128xf32>,
    %c0_54 = arith.constant 0 : index
    %c12_55 = arith.constant 12 : index
    %c0_56 = arith.constant 0 : index
    %c0_57 = arith.constant 0 : index
    %25 = vector.load %arg2[%c0_54, %c12_55, %c0_56, %c0_57] : memref<1x16x16x128xf32, #tpu.memory_space<vmem>>, vector<1x1x16x128xf32>
    %26 = vector.shape_cast %25 : vector<1x1x16x128xf32> to vector<1x16x128xf32>
    %c0_58 = arith.constant 0 : index
    %c20 = arith.constant 20 : index
    %c0_59 = arith.constant 0 : index
    %c0_60 = arith.constant 0 : index
    %27 = vector.load %arg3[%c0_58, %c20, %c0_59, %c0_60] : memref<1x30x16x128xf32, #tpu.memory_space<vmem>>, vector<1x1x16x128xf32>
    %28 = vector.shape_cast %27 : vector<1x1x16x128xf32> to vector<1x16x128xf32>
    %29 = vector.shape_cast %26 : vector<1x16x128xf32> to vector<1x1x16x128xf32>
    tpu.vector_store %arg3[%c0_58, %c20, %c0_59, %c0_60], %29 {strides = array<i32>} : memref<1x30x16x128xf32, #tpu.memory_space<vmem>>, vector<1x1x16x128xf32>,
    %c0_61 = arith.constant 0 : index
    %c6_62 = arith.constant 6 : index
    %c0_63 = arith.constant 0 : index
    %c0_64 = arith.constant 0 : index
    %30 = vector.load %arg2[%c0_61, %c6_62, %c0_63, %c0_64] : memref<1x16x16x128xf32, #tpu.memory_space<vmem>>, vector<1x2x16x128xf32>
    %c0_65 = arith.constant 0 : index
    %c21 = arith.constant 21 : index
    %c0_66 = arith.constant 0 : index
    %c0_67 = arith.constant 0 : index
    %31 = vector.load %arg3[%c0_65, %c21, %c0_66, %c0_67] : memref<1x30x16x128xf32, #tpu.memory_space<vmem>>, vector<1x2x16x128xf32>
    tpu.vector_store %arg3[%c0_65, %c21, %c0_66, %c0_67], %30 {strides = array<i32>} : memref<1x30x16x128xf32, #tpu.memory_space<vmem>>, vector<1x2x16x128xf32>,
    %c0_68 = arith.constant 0 : index
    %c13 = arith.constant 13 : index
    %c0_69 = arith.constant 0 : index
    %c0_70 = arith.constant 0 : index
    %32 = vector.load %arg2[%c0_68, %c13, %c0_69, %c0_70] : memref<1x16x16x128xf32, #tpu.memory_space<vmem>>, vector<1x1x16x128xf32>
    %33 = vector.shape_cast %32 : vector<1x1x16x128xf32> to vector<1x16x128xf32>
    %c0_71 = arith.constant 0 : index
    %c23 = arith.constant 23 : index
    %c0_72 = arith.constant 0 : index
    %c0_73 = arith.constant 0 : index
    %34 = vector.load %arg3[%c0_71, %c23, %c0_72, %c0_73] : memref<1x30x16x128xf32, #tpu.memory_space<vmem>>, vector<1x1x16x128xf32>
    %35 = vector.shape_cast %34 : vector<1x1x16x128xf32> to vector<1x16x128xf32>
    %36 = vector.shape_cast %33 : vector<1x16x128xf32> to vector<1x1x16x128xf32>
    tpu.vector_store %arg3[%c0_71, %c23, %c0_72, %c0_73], %36 {strides = array<i32>} : memref<1x30x16x128xf32, #tpu.memory_space<vmem>>, vector<1x1x16x128xf32>,
    %c0_74 = arith.constant 0 : index
    %c6_75 = arith.constant 6 : index
    %c0_76 = arith.constant 0 : index
    %c0_77 = arith.constant 0 : index
    %37 = vector.load %arg2[%c0_74, %c6_75, %c0_76, %c0_77] : memref<1x16x16x128xf32, #tpu.memory_space<vmem>>, vector<1x2x16x128xf32>
    %c0_78 = arith.constant 0 : index
    %c24 = arith.constant 24 : index
    %c0_79 = arith.constant 0 : index
    %c0_80 = arith.constant 0 : index
    %38 = vector.load %arg3[%c0_78, %c24, %c0_79, %c0_80] : memref<1x30x16x128xf32, #tpu.memory_space<vmem>>, vector<1x2x16x128xf32>
    tpu.vector_store %arg3[%c0_78, %c24, %c0_79, %c0_80], %37 {strides = array<i32>} : memref<1x30x16x128xf32, #tpu.memory_space<vmem>>, vector<1x2x16x128xf32>,
    %c0_81 = arith.constant 0 : index
    %c14_82 = arith.constant 14 : index
    %c0_83 = arith.constant 0 : index
    %c0_84 = arith.constant 0 : index
    %39 = vector.load %arg2[%c0_81, %c14_82, %c0_83, %c0_84] : memref<1x16x16x128xf32, #tpu.memory_space<vmem>>, vector<1x1x16x128xf32>
    %40 = vector.shape_cast %39 : vector<1x1x16x128xf32> to vector<1x16x128xf32>
    %c0_85 = arith.constant 0 : index
    %c26 = arith.constant 26 : index
    %c0_86 = arith.constant 0 : index
    %c0_87 = arith.constant 0 : index
    %41 = vector.load %arg3[%c0_85, %c26, %c0_86, %c0_87] : memref<1x30x16x128xf32, #tpu.memory_space<vmem>>, vector<1x1x16x128xf32>
    %42 = vector.shape_cast %41 : vector<1x1x16x128xf32> to vector<1x16x128xf32>
    %43 = vector.shape_cast %40 : vector<1x16x128xf32> to vector<1x1x16x128xf32>
    tpu.vector_store %arg3[%c0_85, %c26, %c0_86, %c0_87], %43 {strides = array<i32>} : memref<1x30x16x128xf32, #tpu.memory_space<vmem>>, vector<1x1x16x128xf32>,
    %c0_88 = arith.constant 0 : index
    %c6_89 = arith.constant 6 : index
    %c0_90 = arith.constant 0 : index
    %c0_91 = arith.constant 0 : index
    %44 = vector.load %arg2[%c0_88, %c6_89, %c0_90, %c0_91] : memref<1x16x16x128xf32, #tpu.memory_space<vmem>>, vector<1x2x16x128xf32>
    %c0_92 = arith.constant 0 : index
    %c27 = arith.constant 27 : index
    %c0_93 = arith.constant 0 : index
    %c0_94 = arith.constant 0 : index
    %45 = vector.load %arg3[%c0_92, %c27, %c0_93, %c0_94] : memref<1x30x16x128xf32, #tpu.memory_space<vmem>>, vector<1x2x16x128xf32>
    tpu.vector_store %arg3[%c0_92, %c27, %c0_93, %c0_94], %44 {strides = array<i32>} : memref<1x30x16x128xf32, #tpu.memory_space<vmem>>, vector<1x2x16x128xf32>,
    %c0_95 = arith.constant 0 : index
    %c15_96 = arith.constant 15 : index
    %c0_97 = arith.constant 0 : index
    %c0_98 = arith.constant 0 : index
    %46 = vector.load %arg2[%c0_95, %c15_96, %c0_97, %c0_98] : memref<1x16x16x128xf32, #tpu.memory_space<vmem>>, vector<1x1x16x128xf32>
    %47 = vector.shape_cast %46 : vector<1x1x16x128xf32> to vector<1x16x128xf32>
    %c0_99 = arith.constant 0 : index
    %c29 = arith.constant 29 : index
    %c0_100 = arith.constant 0 : index
    %c0_101 = arith.constant 0 : index
    %48 = vector.load %arg3[%c0_99, %c29, %c0_100, %c0_101] : memref<1x30x16x128xf32, #tpu.memory_space<vmem>>, vector<1x1x16x128xf32>
    %49 = vector.shape_cast %48 : vector<1x1x16x128xf32> to vector<1x16x128xf32>
    %50 = vector.shape_cast %47 : vector<1x16x128xf32> to vector<1x1x16x128xf32>
    tpu.vector_store %arg3[%c0_99, %c29, %c0_100, %c0_101], %50 {strides = array<i32>} : memref<1x30x16x128xf32, #tpu.memory_space<vmem>>, vector<1x1x16x128xf32>,
    return
  }
  func.func @transform_0(%arg0: i32, %arg1: i32) -> (i32, i32, i32, i32) {
    %c0_i32 = arith.constant 0 : i32
    %c0_i32_0 = arith.constant 0 : i32
    %c0_i32_1 = arith.constant 0 : i32
    return %arg0, %c0_i32, %arg1, %c0_i32_0 : i32, i32, i32, i32
  }
  func.func @transform_1(%arg0: i32, %arg1: i32) -> (i32, i32, i32, i32) {
    %c0_i32 = arith.constant 0 : i32
    %c0_i32_0 = arith.constant 0 : i32
    %c0_i32_1 = arith.constant 0 : i32
    return %arg0, %c0_i32, %arg1, %c0_i32_0 : i32, i32, i32, i32
  }
}

</mosaic_0001>

<llo_original>
// kernel: tpu_custom_call.1
$region0: #{tpu_custom_call.1}
  #allocation0 [shape = 'u32[]', space=smem, size = 0x4, offset = 0x4, fixed_abs, tag = 'smem constant byte address 0x4 - core index']
  #allocation1 [shape = 'u32[144,128]{1,0:T(1,128)}', space=vmem, size = 0x12000, scoped, tag = 'internal scratch']
  %s0 = inlined_call_operand.hbm [shape: f32[2,16,16,128], index: 0, kind: input, shape index: {}]
  %s1 = inlined_call_operand.hbm [shape: f32[2,30,16,128], index: 1, kind: output, shape index: {}]
  %s2 = sld [smem:[#allocation0]]
  $region41: #{tpu_custom_call.1} parent=0
    _
  %s4 = ssub.s32 1, %s2
  %s5 = scalar_select 0, %s4, %s2
  $region1: #{tpu_custom_call.1} parent=0
    #allocation2 [shape = 'u8[262144]{0}', space=vmem, size = 0x40000, scoped, tag = 'input window, operand 0']
    #allocation3 [shape = 's32[2]{0}', space=sflag, size = 0x8, scoped, tag = 'scoped memory for tpu_custom_call.1']
    #allocation4 [shape = 's32[2]{0}', space=sflag, size = 0x8, scoped, tag = 'scoped memory for tpu_custom_call.1']
    #allocation5 [shape = 'u8[491520]{0}', space=vmem, size = 0x78000, scoped, tag = 'output window, operand 0']
    %6 = vsyncpa [#allocation3], 0
    %s7 = scalar_lea.sflag [#allocation3], 1
    %8 = vsyncpa %s7, 0
    %9 = vsyncpa [#allocation4], 0
    %s10 = scalar_lea.sflag [#allocation4], 1
    %11 = vsyncpa %s10, 0
    loop: start=0, step=1, limit=4
    $region2: #{tpu_custom_call.1} parent=1 // loop_pre_header
      _
    $region3: #{tpu_custom_call.1} parent=1 // loop_header
      %s13 = sphi 0, %s17
      %p14 = scmp.ge.s32.totalorder %s13, 4
      %s20 = sphi 0, %s32
      %s21 = sphi 0, %s28
      %s22 = sphi 0, %s20
      %s23 = sphi 0, %s21
      %s24 = sphi 0, %s22
      %s25 = sphi 0, %s23
      %s37 = sphi 0, %s39
      %s40 = sphi 0, %s37
      %s41 = sphi 0, %s40
      %s57 = sphi 0, %s41
      %s65 = sphi 0, %s67
      %s68 = sphi 0, %s65
      %s69 = sphi 0, %s68
      %s85 = sphi 0, %s69
    $region4: #{tpu_custom_call.1} parent=1 // loop_header_branch
      %16 = sbr.rel (%p14) target = $region8
    $region5: #{tpu_custom_call.1} parent=1 // loop_body
      %s18 = ssub.s32 %s13, 1
      %s19 = ssub.s32 %s13, 2
      %s26 = sadd.s32 1, %s21
      %p27 = scmp.ge.s32.totalorder %s26, 1
      %s28 = scalar_select %p27, 0, %s26
      %s29 = sadd.s32 1, %s20
      %s30 = scalar_select %p27, %s29, %s20
      %p31 = scmp.ge.s32.totalorder %s30, 2
      %s32 = scalar_select %p31, 0, %s30
      %s33 = ssub.s32 %s20, %s32
      %s34 = ssub.s32 %s21, %s28
      %s35 = sor.u32 %s33, %s34
      %p36 = scmp.eq.s32.totalorder %s35, 0
      %s38 = sadd.s32 %s37, 1
      %s39 = scalar_select %p36, %s37, %s38
      %p42 = pneg %p36
      %p43 = scmp.eq.s32.totalorder %s13, 1
      %p44 = por %p42, %p43
      %p45 = scmp.ne.s32.totalorder %s37, %s40
      %p46 = scmp.eq.s32.totalorder %s13, 0
      %p47 = por %p45, %p46
      %p48 = scmp.ne.s32.totalorder %s37, %s40
      %p49 = scmp.eq.s32.totalorder %s18, 1
      %p50 = por %p48, %p49
      %p51 = scmp.ne.s32.totalorder %s40, %s41
      %p52 = scmp.eq.s32.totalorder %s18, 0
      %p53 = por %p51, %p52
      %p54 = scmp.ne.s32.totalorder %s40, %s41
      %p55 = scmp.eq.s32.totalorder %s19, 1
      %p56 = por %p54, %p55
      %p58 = scmp.ne.s32.totalorder %s41, %s57
      %p59 = scmp.eq.s32.totalorder %s19, 0
      %p60 = por %p58, %p59
      %s61 = ssub.s32 %s20, %s32
      %s62 = ssub.s32 %s21, %s28
      %s63 = sor.u32 %s61, %s62
      %p64 = scmp.eq.s32.totalorder %s63, 0
      %s66 = sadd.s32 %s65, 1
      %s67 = scalar_select %p64, %s65, %s66
      %p70 = pneg %p64
      %p71 = scmp.eq.s32.totalorder %s13, 1
      %p72 = por %p70, %p71
      %p73 = scmp.ne.s32.totalorder %s65, %s68
      %p74 = scmp.eq.s32.totalorder %s13, 0
      %p75 = por %p73, %p74
      %p76 = scmp.ne.s32.totalorder %s65, %s68
      %p77 = scmp.eq.s32.totalorder %s18, 1
      %p78 = por %p76, %p77
      %p79 = scmp.ne.s32.totalorder %s68, %s69
      %p80 = scmp.eq.s32.totalorder %s18, 0
      %p81 = por %p79, %p80
      %p82 = scmp.ne.s32.totalorder %s68, %s69
      %p83 = scmp.eq.s32.totalorder %s19, 1
      %p84 = por %p82, %p83
      %p86 = scmp.ne.s32.totalorder %s69, %s85
      %p87 = scmp.eq.s32.totalorder %s19, 0
      %p88 = por %p86, %p87
      %p89 = scmp.le.s32.totalorder 1, %s13
      %p90 = scmp.lt.s32.totalorder %s13, 3
      %p91 = pnand %p89, %p90
      %p92 = pneg %p91
      // Predicated region
      $region9: #{tpu_custom_call.1} parent=5 // pred_check
        _
      $region10: #{tpu_custom_call.1} parent=5 // pred_check_branch
        %94 = sbr.rel (%p91) target = $region12
      $region11: #{tpu_custom_call.1} parent=5 // pred_region
        %s95 = ssub.s32 %s13, 1
      $region12: #{tpu_custom_call.1} parent=5 // pred_fallthru
        _
      %p96 = scmp.lt.s32.totalorder %s13, 2
      // Predicated region
      $region13: #{tpu_custom_call.1} parent=5 // pred_check
        %p97 = pneg %p96
      $region14: #{tpu_custom_call.1} parent=5 // pred_check_branch
        %99 = sbr.rel (%p97) target = $region16
      $region15: #{tpu_custom_call.1} parent=5 // pred_region
        // Predicated region
        $region17: #{tpu_custom_call.1} parent=15 // pred_check
          %p100 = pneg %p47
        $region18: #{tpu_custom_call.1} parent=15 // pred_check_branch
          %102 = sbr.rel (%p100) target = $region20
        $region19: #{tpu_custom_call.1} parent=15 // pred_region
          %s103 = sand.u32 %s37, 1
          %s104 = scalar_lea.sflag [#allocation3], %s103
          %s105 = sand.u32 %s37, 1
          %s106 = smul.addr %s105, 256
          %s107 = scalar_lea.vmem [#allocation2], %s106
          %s108 = smul.u32 2, %s21
          %s110 = ssub.s32 4096, 4096
          %111 = vsyncadd %s104, %s110
          %s112 = smul.addr %s20, 32
          %s113 = sadd.s32 %s108, %s112
          %s114 = smul.addr %s113, 128
          %s115 = scalar_lea.hbm %s0, %s114
          %s116 = sshll.u32 %s107, 4
          %s117 = int_to_ptr.vmem [resolvable:$true] %s116
          %122 = dma.hbm_to_vmem [thread:$0]  %s115, 4096, %s117, %s104, 128, 128, 8
        $region20: #{tpu_custom_call.1} parent=15 // pred_fallthru
          _
      $region16: #{tpu_custom_call.1} parent=5 // pred_fallthru
        _
      %p123 = scmp.le.s32.totalorder 1, %s13
      %p124 = scmp.lt.s32.totalorder %s13, 3
      %p125 = pnand %p123, %p124
      %p126 = pneg %p125
      // Predicated region
      $region21: #{tpu_custom_call.1} parent=5 // pred_check
        _
      $region22: #{tpu_custom_call.1} parent=5 // pred_check_branch
        %128 = sbr.rel (%p125) target = $region24
      $region23: #{tpu_custom_call.1} parent=5 // pred_region
        %s129 = ssub.s32 %s13, 1
        %s130 = sand.u32 %s40, 1
        %s131 = scalar_lea.sflag [#allocation3], %s130
        %s132 = sand.u32 %s40, 1
        %s133 = smul.addr %s132, 256
        %s134 = scalar_lea.vmem [#allocation2], %s133
        // Predicated region
        $region25: #{tpu_custom_call.1} parent=23 // pred_check
          %p135 = pneg %p53
        $region26: #{tpu_custom_call.1} parent=23 // pred_check_branch
          %137 = sbr.rel (%p135) target = $region28
        $region27: #{tpu_custom_call.1} parent=23 // pred_region
          %138 = dma.done %s131, 4096
        $region28: #{tpu_custom_call.1} parent=23 // pred_fallthru
          _
        %s139 = sand.u32 %s40, 1
        %s140 = scalar_lea.sflag [#allocation3], %s139
        %s141 = sand.u32 %s40, 1
        %s142 = smul.addr %s141, 256
        %s143 = scalar_lea.vmem [#allocation2], %s142
        %p144 = pneg %p53
        %p145 = pneg %p50
        %p146 = pneg %p81
        %p147 = pneg %p78
        %s148 = sand.u32 %s68, 1
        %s149 = scalar_lea.sflag [#allocation4], %s148
        %s150 = sand.u32 %s68, 1
        %s151 = smul.addr %s150, 480
        %s152 = scalar_lea.vmem [#allocation5], %s151
        %s153 = smul.u32 2, %s23
        %s154 = smul.u32 2, %s23
        %v155 = vld [vmem:[%s134] sm:$0xff]
        %v156 = vld [vmem:[%s134 + $0x8] sm:$0xff]
        %v157 = vld [vmem:[%s134 + $0x10] sm:$0xff]
        %v158 = vld [vmem:[%s134 + $0x18] sm:$0xff]
        %v159 = vld [vmem:[%s134 + $0x20] sm:$0xff]
        %v160 = vld [vmem:[%s134 + $0x28] sm:$0xff]
        %v161 = vld [vmem:[%s134 + $0x30] sm:$0xff]
        %v162 = vld [vmem:[%s134 + $0x38] sm:$0xff]
        %v163 = vld [vmem:[%s134 + $0x40] sm:$0xff]
        %v164 = vld [vmem:[%s134 + $0x48] sm:$0xff]
        %v165 = vld [vmem:[%s134 + $0x50] sm:$0xff]
        %v166 = vld [vmem:[%s134 + $0x58] sm:$0xff]
        %v167 = vld [vmem:[%s134 + $0x60] sm:$0xff]
        %v168 = vld [vmem:[%s134 + $0x68] sm:$0xff]
        %v169 = vld [vmem:[%s134 + $0x70] sm:$0xff]
        %v170 = vld [vmem:[%s134 + $0x78] sm:$0xff]
        %v171 = vld [vmem:[%s134 + $0x80] sm:$0xff]
        %v172 = vld [vmem:[%s134 + $0x88] sm:$0xff]
        %173 = vst [vmem:[%s152] sm:$0xff] %v155
        %174 = vst [vmem:[%s152 + $0x8] sm:$0xff] %v156
        %175 = vst [vmem:[%s152 + $0x10] sm:$0xff] %v157
        %176 = vst [vmem:[%s152 + $0x18] sm:$0xff] %v158
        %177 = vst [vmem:[%s152 + $0x20] sm:$0xff] %v159
        %178 = vst [vmem:[%s152 + $0x28] sm:$0xff] %v160
        %179 = vst [vmem:[%s152 + $0x30] sm:$0xff] %v161
        %180 = vst [vmem:[%s152 + $0x38] sm:$0xff] %v162
        %181 = vst [vmem:[%s152 + $0x40] sm:$0xff] %v163
        %182 = vst [vmem:[%s152 + $0x48] sm:$0xff] %v164
        %183 = vst [vmem:[%s152 + $0x50] sm:$0xff] %v165
        %184 = vst [vmem:[%s152 + $0x58] sm:$0xff] %v166
        %185 = vst [vmem:[%s152 + $0x60] sm:$0xff] %v167
        %186 = vst [vmem:[%s152 + $0x68] sm:$0xff] %v168
        %187 = vst [vmem:[%s152 + $0x70] sm:$0xff] %v169
        %188 = vst [vmem:[%s152 + $0x78] sm:$0xff] %v170
        %189 = vst [vmem:[%s152 + $0x80] sm:$0xff] %v171
        %190 = vst [vmem:[%s152 + $0x88] sm:$0xff] %v172
        %s191 = scalar_lea.vmem %s134, 96 [#allocation2]
        %v192 = vld [vmem:[%s191] sm:$0xff]
        %v193 = vld [vmem:[%s191 + $0x8] sm:$0xff]
        %v194 = vld [vmem:[%s191 + $0x10] sm:$0xff]
        %v195 = vld [vmem:[%s191 + $0x18] sm:$0xff]
        %s196 = scalar_lea.vmem %s152, 144 [#allocation5]
        %197 = vst [vmem:[%s196] sm:$0xff] %v192
        %198 = vst [vmem:[%s196 + $0x8] sm:$0xff] %v193
        %199 = vst [vmem:[%s196 + $0x10] sm:$0xff] %v194
        %200 = vst [vmem:[%s196 + $0x18] sm:$0xff] %v195
        %s201 = scalar_lea.vmem %s134, 144 [#allocation2]
        %v202 = vld [vmem:[%s201] sm:$0xff]
        %v203 = vld [vmem:[%s201 + $0x8] sm:$0xff]
        %s204 = scalar_lea.vmem %s152, 176 [#allocation5]
        %205 = vst [vmem:[%s204] sm:$0xff] %v202
        %206 = vst [vmem:[%s204 + $0x8] sm:$0xff] %v203
        %v207 = vld [vmem:[%s191] sm:$0xff]
        %v208 = vld [vmem:[%s191 + $0x8] sm:$0xff]
        %v209 = vld [vmem:[%s191 + $0x10] sm:$0xff]
        %v210 = vld [vmem:[%s191 + $0x18] sm:$0xff]
        %s211 = scalar_lea.vmem %s152, 192 [#allocation5]
        %212 = vst [vmem:[%s211] sm:$0xff] %v207
        %213 = vst [vmem:[%s211 + $0x8] sm:$0xff] %v208
        %214 = vst [vmem:[%s211 + $0x10] sm:$0xff] %v209
        %215 = vst [vmem:[%s211 + $0x18] sm:$0xff] %v210
        %s216 = scalar_lea.vmem %s134, 160 [#allocation2]
        %v217 = vld [vmem:[%s216] sm:$0xff]
        %v218 = vld [vmem:[%s216 + $0x8] sm:$0xff]
        %s219 = scalar_lea.vmem %s152, 224 [#allocation5]
        %220 = vst [vmem:[%s219] sm:$0xff] %v217
        %221 = vst [vmem:[%s219 + $0x8] sm:$0xff] %v218
        %v222 = vld [vmem:[%s191] sm:$0xff]
        %v223 = vld [vmem:[%s191 + $0x8] sm:$0xff]
        %v224 = vld [vmem:[%s191 + $0x10] sm:$0xff]
        %v225 = vld [vmem:[%s191 + $0x18] sm:$0xff]
        %s226 = scalar_lea.vmem %s152, 240 [#allocation5]
        %227 = vst [vmem:[%s226] sm:$0xff] %v222
        %228 = vst [vmem:[%s226 + $0x8] sm:$0xff] %v223
        %229 = vst [vmem:[%s226 + $0x10] sm:$0xff] %v224
        %230 = vst [vmem:[%s226 + $0x18] sm:$0xff] %v225
        %s231 = scalar_lea.vmem %s134, 176 [#allocation2]
        %v232 = vld [vmem:[%s231] sm:$0xff]
        %v233 = vld [vmem:[%s231 + $0x8] sm:$0xff]
        %s234 = scalar_lea.vmem %s152, 272 [#allocation5]
        %235 = vst [vmem:[%s234] sm:$0xff] %v232
        %236 = vst [vmem:[%s234 + $0x8] sm:$0xff] %v233
        %v237 = vld [vmem:[%s191] sm:$0xff]
        %v238 = vld [vmem:[%s191 + $0x8] sm:$0xff]
        %v239 = vld [vmem:[%s191 + $0x10] sm:$0xff]
        %v240 = vld [vmem:[%s191 + $0x18] sm:$0xff]
        %s241 = scalar_lea.vmem %s152, 288 [#allocation5]
        %242 = vst [vmem:[%s241] sm:$0xff] %v237
        %243 = vst [vmem:[%s241 + $0x8] sm:$0xff] %v238
        %244 = vst [vmem:[%s241 + $0x10] sm:$0xff] %v239
        %245 = vst [vmem:[%s241 + $0x18] sm:$0xff] %v240
        %s246 = scalar_lea.vmem %s134, 192 [#allocation2]
        %v247 = vld [vmem:[%s246] sm:$0xff]
        %v248 = vld [vmem:[%s246 + $0x8] sm:$0xff]
        %s249 = scalar_lea.vmem %s152, 320 [#allocation5]
        %250 = vst [vmem:[%s249] sm:$0xff] %v247
        %251 = vst [vmem:[%s249 + $0x8] sm:$0xff] %v248
        %v252 = vld [vmem:[%s191] sm:$0xff]
        %v253 = vld [vmem:[%s191 + $0x8] sm:$0xff]
        %v254 = vld [vmem:[%s191 + $0x10] sm:$0xff]
        %v255 = vld [vmem:[%s191 + $0x18] sm:$0xff]
        %s256 = scalar_lea.vmem %s152, 336 [#allocation5]
        %257 = vst [vmem:[%s256] sm:$0xff] %v252
        %258 = vst [vmem:[%s256 + $0x8] sm:$0xff] %v253
        %259 = vst [vmem:[%s256 + $0x10] sm:$0xff] %v254
        %260 = vst [vmem:[%s256 + $0x18] sm:$0xff] %v255
        %s261 = scalar_lea.vmem %s134, 208 [#allocation2]
        %v262 = vld [vmem:[%s261] sm:$0xff]
        %v263 = vld [vmem:[%s261 + $0x8] sm:$0xff]
        %s264 = scalar_lea.vmem %s152, 368 [#allocation5]
        %265 = vst [vmem:[%s264] sm:$0xff] %v262
        %266 = vst [vmem:[%s264 + $0x8] sm:$0xff] %v263
        %v267 = vld [vmem:[%s191] sm:$0xff]
        %v268 = vld [vmem:[%s191 + $0x8] sm:$0xff]
        %v269 = vld [vmem:[%s191 + $0x10] sm:$0xff]
        %v270 = vld [vmem:[%s191 + $0x18] sm:$0xff]
        %s271 = scalar_lea.vmem %s152, 384 [#allocation5]
        %272 = vst [vmem:[%s271] sm:$0xff] %v267
        %273 = vst [vmem:[%s271 + $0x8] sm:$0xff] %v268
        %274 = vst [vmem:[%s271 + $0x10] sm:$0xff] %v269
        %275 = vst [vmem:[%s271 + $0x18] sm:$0xff] %v270
        %s276 = scalar_lea.vmem %s134, 224 [#allocation2]
        %v277 = vld [vmem:[%s276] sm:$0xff]
        %v278 = vld [vmem:[%s276 + $0x8] sm:$0xff]
        %s279 = scalar_lea.vmem %s152, 416 [#allocation5]
        %280 = vst [vmem:[%s279] sm:$0xff] %v277
        %281 = vst [vmem:[%s279 + $0x8] sm:$0xff] %v278
        %v282 = vld [vmem:[%s191] sm:$0xff]
        %v283 = vld [vmem:[%s191 + $0x8] sm:$0xff]
        %v284 = vld [vmem:[%s191 + $0x10] sm:$0xff]
        %v285 = vld [vmem:[%s191 + $0x18] sm:$0xff]
        %s286 = scalar_lea.vmem %s152, 432 [#allocation5]
        %287 = vst [vmem:[%s286] sm:$0xff] %v282
        %288 = vst [vmem:[%s286 + $0x8] sm:$0xff] %v283
        %289 = vst [vmem:[%s286 + $0x10] sm:$0xff] %v284
        %290 = vst [vmem:[%s286 + $0x18] sm:$0xff] %v285
        %s291 = scalar_lea.vmem %s134, 240 [#allocation2]
        %v292 = vld [vmem:[%s291] sm:$0xff]
        %v293 = vld [vmem:[%s291 + $0x8] sm:$0xff]
        %s294 = scalar_lea.vmem %s152, 464 [#allocation5]
        %295 = vst [vmem:[%s294] sm:$0xff] %v292
        %296 = vst [vmem:[%s294 + $0x8] sm:$0xff] %v293
        %s297 = sand.u32 %s68, 1
        %s298 = scalar_lea.sflag [#allocation4], %s297
        %s299 = sand.u32 %s68, 1
        %s300 = smul.addr %s299, 480
        %s301 = scalar_lea.vmem [#allocation5], %s300
        // Predicated region
        $region29: #{tpu_custom_call.1} parent=23 // pred_check
          %p302 = pneg %p78
        $region30: #{tpu_custom_call.1} parent=23 // pred_check_branch
          %304 = sbr.rel (%p302) target = $region32
        $region31: #{tpu_custom_call.1} parent=23 // pred_region
          %s305 = smul.u32 2, %s23
          %s307 = ssub.s32 7680, 7680
          %308 = vsyncadd %s298, %s307
          %s309 = smul.addr %s22, 60
          %s310 = sadd.s32 %s305, %s309
          %s311 = smul.addr %s310, 128
          %s312 = scalar_lea.hbm %s1, %s311
          %s313 = sshll.u32 %s301, 4
          %s314 = int_to_ptr.vmem [resolvable:$true] %s313
          %319 = dma.vmem_to_hbm [thread:$0]  %s314, 7680, %s312, %s298, 128, 128, 8
        $region32: #{tpu_custom_call.1} parent=23 // pred_fallthru
          _
      $region24: #{tpu_custom_call.1} parent=5 // pred_fallthru
        _
      %p320 = scmp.le.s32.totalorder 2, %s13
      // Predicated region
      $region33: #{tpu_custom_call.1} parent=5 // pred_check
        %p321 = pneg %p320
      $region34: #{tpu_custom_call.1} parent=5 // pred_check_branch
        %323 = sbr.rel (%p321) target = $region36
      $region35: #{tpu_custom_call.1} parent=5 // pred_region
        %s324 = ssub.s32 %s13, 2
        // Predicated region
        $region37: #{tpu_custom_call.1} parent=35 // pred_check
          %p325 = pneg %p84
        $region38: #{tpu_custom_call.1} parent=35 // pred_check_branch
          %327 = sbr.rel (%p325) target = $region40
        $region39: #{tpu_custom_call.1} parent=35 // pred_region
          %s328 = sand.u32 %s69, 1
          %s329 = scalar_lea.sflag [#allocation4], %s328
          %s330 = sand.u32 %s69, 1
          %s331 = smul.addr %s330, 480
          %s332 = scalar_lea.vmem [#allocation5], %s331
          %333 = dma.done %s329, 7680
        $region40: #{tpu_custom_call.1} parent=35 // pred_fallthru
          _
      $region36: #{tpu_custom_call.1} parent=5 // pred_fallthru
        _
    $region6: #{tpu_custom_call.1} parent=1 // loop_footer
      %s17 = sadd.s32 1, %s13
    $region7: #{tpu_custom_call.1} parent=1 // loop_footer_branch
      %12 = sbr.rel target = $region3
    $region8: #{tpu_custom_call.1} parent=1 // loop_exit
      _
    %334 = vsyncpa [#allocation3], 1
    %s335 = scalar_lea.sflag [#allocation3], 1
    %336 = vsyncpa %s335, 1
    %337 = vsyncpa [#allocation4], 1
    %s338 = scalar_lea.sflag [#allocation4], 1
    %339 = vsyncpa %s338, 1

</llo_original>
